<compile_context>
chip_gen: v5e
topology: v5e:2x2
jax: 0.10.0
libtpu: 0.0.40
codegen_flags: <defaults>
</compile_context>

<pallas_src>
import jax
import jax.numpy as jnp
from jax import lax
from jax.experimental import pallas as pl
from jax.experimental.pallas import tpu as pltpu


B_TILE = 8  # batch rows per grid program (sublane-full recurrence tiles)


def rcnn_kernel(x_ref, wih_ref, whh_ref, brnn_ref, wcg_ref, bcg_ref,
                out_ref, pad_ref):
    # Per-program (one batch tile) shapes, all time-major:
    #   x_ref:    [S, Bt, Hp]        inputs for Bt batch rows
    #   wih_ref:  [Hp, Hp]           = W_ih.T (zero-padded)
    #   whh_ref:  [Hp, Hp]           = W_hh.T (zero-padded)
    #   brnn_ref: [1, Hp]            = b_ih + b_hh
    #   wcg_ref:  [K*Hp, 2*Hp]       fused conv|gate weights (tap-major rows)
    #   bcg_ref:  [1, 2*Hp]          fused conv|gate bias
    #   out_ref:  [S, Bt, Hp]        (also used as the xw staging buffer)
    #   pad_ref:  [S+K-1, Bt, Hp]    zero-padded RNN outputs ('same' conv)
    S, Bt, Hp = x_ref.shape
    K = wcg_ref.shape[0] // Hp
    pad = (K - 1) // 2  # PyTorch padding='same' left pad

    # ---- hoisted input projection: one big MXU matmul, both RNN biases folded
    xw = jnp.dot(x_ref[...].reshape(S * Bt, Hp), wih_ref[...],
                 preferred_element_type=jnp.float32) + brnn_ref[...]
    # out_ref doubles as the xw buffer: it is only DMA'd out after the body,
    # and nothing reads it before the final overwrite below.
    out_ref[...] = xw.reshape(S, Bt, Hp)

    # ---- zero only the 'same'-padding rows of the padded RNN-output buffer
    if pad > 0:
        pad_ref[0:pad] = jnp.zeros((pad, Bt, Hp), jnp.float32)
    if K - 1 - pad > 0:
        pad_ref[pad + S:] = jnp.zeros((K - 1 - pad, Bt, Hp), jnp.float32)

    # ---- batched sequential RNN: h_t = tanh(xw_t + h_{t-1} @ W_hh.T), h_0 = 0
    whh = whh_ref[...]

    def rnn_step(t, h_prev):
        h_new = jnp.tanh(out_ref[t] +
                         jnp.dot(h_prev, whh,
                                 preferred_element_type=jnp.float32))
        pad_ref[t + pad] = h_new            # full [Bt, Hp] tile store
        return h_new

    # S is static -> full unroll gives the scheduler cross-step visibility.
    lax.fori_loop(0, S, rnn_step, jnp.zeros((Bt, Hp), jnp.float32),
                  unroll=True)

    # ---- GatedCNN: tile-aligned im2col + one deep-contraction matmul ----
    # Shifted taps slice only the leading time axis, whose unit is a whole
    # [Bt, Hp] = (8, 128) tile, so no relayout copies are generated.
    taps = [pad_ref[k:k + S].reshape(S * Bt, Hp) for k in range(K)]
    im2col = jnp.concatenate(taps, axis=-1)                 # [S*Bt, K*Hp]
    ag = jnp.dot(im2col, wcg_ref[...],
                 preferred_element_type=jnp.float32) + bcg_ref[...]
    a = ag[:, :Hp]
    g = ag[:, Hp:]
    out_ref[...] = (a * jax.nn.sigmoid(g)).reshape(S, Bt, Hp)


def _round_up(n, m):
    return ((n + m - 1) // m) * m


def prepare_params(params, hidden_size):
    """Pad/transpose/fuse the weights ONCE (outside the per-call path).

    Padded lanes stay exactly zero through the whole network (tanh(0)=0,
    zero weight rows/cols, zero bias), so slicing the output back to H is
    exact.
    """
    (w_ih, w_hh, b_ih, b_hh, w_cnn, b_cnn, w_gate, b_gate) = params
    H = hidden_size
    K = w_cnn.shape[-1]
    Hp = _round_up(H, 128)
    ph = Hp - H

    wih = jnp.pad(w_ih.T, ((0, ph), (0, ph))).astype(jnp.float32)
    whh = jnp.pad(w_hh.T, ((0, ph), (0, ph))).astype(jnp.float32)
    brnn = jnp.pad((b_ih + b_hh).reshape(1, H),
                   ((0, 0), (0, ph))).astype(jnp.float32)

    # Conv weights: PyTorch [Cout, Cin, K] -> [K, Cin, Cout]; fuse conv|gate on
    # the output axis, then flatten tap-major -> [K*Hp, 2*Hp].
    wc = jnp.pad(jnp.transpose(w_cnn, (2, 1, 0)), ((0, 0), (0, ph), (0, ph)))
    wg = jnp.pad(jnp.transpose(w_gate, (2, 1, 0)), ((0, 0), (0, ph), (0, ph)))
    wcg = jnp.concatenate([wc, wg], axis=-1).reshape(K * Hp, 2 * Hp)
    wcg = wcg.astype(jnp.float32)
    bcg = jnp.concatenate([jnp.pad(b_cnn, (0, ph)),
                           jnp.pad(b_gate, (0, ph))]).reshape(1, 2 * Hp)
    bcg = bcg.astype(jnp.float32)
    return (wih, whh, brnn, wcg, bcg, H, K, Hp)


def rcnn_pallas(x, prepared):
    """x: [B, S, H] batch-first (PyTorch layout). Returns [B, S, H]."""
    wih, whh, brnn, wcg, bcg, H, K, Hp = prepared
    B, S, _ = x.shape
    Bp = _round_up(B, B_TILE)
    nb = Bp // B_TILE        # >= 2 programs once B > 8 -> shards v7x's 2 TCs

    # Time-major, zero-padded input: [S, Bp, Hp].  Padded batch rows compute
    # garbage independently and are sliced off at the end.
    xt = jnp.transpose(x, (1, 0, 2)).astype(jnp.float32)
    xt = jnp.pad(xt, ((0, 0), (0, Bp - B), (0, Hp - H)))

    flops = (2 * Bp * S * Hp * Hp            # x @ W_ih
             + 2 * Bp * S * Hp * Hp          # h @ W_hh (per step, summed)
             + 2 * Bp * S * (K * Hp) * (2 * Hp))   # fused conv|gate
    bytes_accessed = 4 * (2 * S * Bp * Hp            # x + out
                          + 2 * Hp * Hp              # W_ih, W_hh
                          + K * Hp * 2 * Hp          # fused conv|gate W
                          + 3 * Hp)                  # biases
    cost = pl.CostEstimate(flops=flops,
                           transcendentals=2 * Bp * S * Hp,   # tanh + sigmoid
                           bytes_accessed=bytes_accessed)

    out = pl.pallas_call(
        rcnn_kernel,
        out_shape=jax.ShapeDtypeStruct((S, Bp, Hp), jnp.float32),
        grid_spec=pltpu.PrefetchScalarGridSpec(
            num_scalar_prefetch=0,
            grid=(nb,),
            in_specs=[
                pl.BlockSpec((S, B_TILE, Hp), lambda g: (0, g, 0)),   # x
                pl.BlockSpec((Hp, Hp), lambda g: (0, 0)),             # W_ih.T
                pl.BlockSpec((Hp, Hp), lambda g: (0, 0)),             # W_hh.T
                pl.BlockSpec((1, Hp), lambda g: (0, 0)),              # b_ih+b_hh
                pl.BlockSpec((K * Hp, 2 * Hp), lambda g: (0, 0)),     # conv|gate W
                pl.BlockSpec((1, 2 * Hp), lambda g: (0, 0)),          # conv|gate b
            ],
            out_specs=pl.BlockSpec((S, B_TILE, Hp), lambda g: (0, g, 0)),
            scratch_shapes=[
                pltpu.VMEM((S + K - 1, B_TILE, Hp), jnp.float32),  # padded RNN out
            ],
        ),
        compiler_params=pltpu.CompilerParams(
            dimension_semantics=("parallel",),   # batch tiles are independent
            vmem_limit_bytes=32 * 1024 * 1024,   # tiny footprint; safe on v7x too
        ),
        cost_estimate=cost,
    )(xt, wih, whh, brnn, wcg, bcg)

    return jnp.transpose(out, (1, 0, 2))[:B, :, :H]


def rcnn_reference(x, params):
    """Pure-JAX reference matching the PyTorch module (f32, HIGHEST precision)."""
    (w_ih, w_hh, b_ih, b_hh, w_cnn, b_cnn, w_gate, b_gate) = params
    B, S, H = x.shape
    K = w_cnn.shape[-1]
    pad_l = (K - 1) // 2
    prec = lax.Precision.HIGHEST

    h = jnp.zeros((B, H), jnp.float32)
    outs = []
    for t in range(S):
        h = jnp.tanh(jnp.dot(x[:, t], w_ih.T, precision=prec) + b_ih
                     + jnp.dot(h, w_hh.T, precision=prec) + b_hh)
        outs.append(h)
    r = jnp.stack(outs, axis=1)                               # [B, S, H]
    rp = jnp.pad(r, ((0, 0), (pad_l, K - 1 - pad_l), (0, 0)))

    def conv(w, b):
        out = jnp.zeros((B, S, H), jnp.float32) + b
        for k in range(K):
            out = out + jnp.einsum('bsh,oh->bso', rp[:, k:k + S], w[:, :, k],
                                   precision=prec)
        return out

    a = conv(w_cnn, b_cnn)
    g = conv(w_gate, b_gate)
    return a * jax.nn.sigmoid(g)


def init_params(key, hidden_size, kernel_size):
    """Deterministic synthetic params with PyTorch-like uniform init scale."""
    ks = jax.random.split(key, 8)
    bound = 1.0 / jnp.sqrt(hidden_size)

    def u(k, shape):
        return jax.random.uniform(k, shape, jnp.float32, -bound, bound)

    w_ih = u(ks[0], (hidden_size, hidden_size))                   # RNN W_ih
    w_hh = u(ks[1], (hidden_size, hidden_size))                   # RNN W_hh
    b_ih = u(ks[2], (hidden_size,))
    b_hh = u(ks[3], (hidden_size,))
    w_cnn = u(ks[4], (hidden_size, hidden_size, kernel_size))     # Conv1d weight
    b_cnn = u(ks[5], (hidden_size,))
    w_gate = u(ks[6], (hidden_size, hidden_size, kernel_size))
    b_gate = u(ks[7], (hidden_size,))
    return (w_ih, w_hh, b_ih, b_hh, w_cnn, b_cnn, w_gate, b_gate)


if __name__ == "__main__":
    B, S, H, K = 2, 8, 32, 3   # config: hidden_size=32, kernel_size=3
    key = jax.random.PRNGKey(0)
    k_x, k_p = jax.random.split(key)
    x = jax.random.normal(k_x, (B, S, H), jnp.float32)
    params = init_params(k_p, H, K)

    prepared = prepare_params(params, H)      # weight prep done once, off the call path
    y = jax.block_until_ready(rcnn_pallas(x, prepared))
    y_ref = jax.block_until_ready(rcnn_reference(x, params))

    assert y.shape == (B, S, H)
    assert jnp.allclose(y, y_ref, rtol=1e-4, atol=1e-4), \
        f"max abs err {jnp.max(jnp.abs(y - y_ref))}"
    print("KERNEL_OK")
</pallas_src>

<mosaic_0001>
module attributes {stable_mosaic.version = 11 : i64} {
  func.func @rcnn_kernel(%arg0: i32, %arg1: memref<8x8x128xf32, #tpu.memory_space<vmem>>, %arg2: memref<128x128xf32, #tpu.memory_space<vmem>>, %arg3: memref<128x128xf32, #tpu.memory_space<vmem>>, %arg4: memref<1x128xf32, #tpu.memory_space<vmem>>, %arg5: memref<384x256xf32, #tpu.memory_space<vmem>>, %arg6: memref<1x256xf32, #tpu.memory_space<vmem>>, %arg7: memref<8x8x128xf32, #tpu.memory_space<vmem>>, %arg8: memref<10x8x128xf32, #tpu.memory_space<vmem>>) attributes {dimension_semantics = [#tpu.dimension_semantics<parallel>], iteration_bounds = array<i64: 1>, scalar_prefetch = 0 : i64, scratch_operands = 1 : i64, tpu.core_type = #tpu.core_type<tc>, window_params = [{transform_indices = @transform_0, window_bounds = array<i64: 8, 8, 128>}, {pipeline_mode = #tpu.pipeline_mode<synchronous>, transform_indices = @transform_1, window_bounds = array<i64: 128, 128>}, {pipeline_mode = #tpu.pipeline_mode<synchronous>, transform_indices = @transform_2, window_bounds = array<i64: 128, 128>}, {pipeline_mode = #tpu.pipeline_mode<synchronous>, transform_indices = @transform_3, window_bounds = array<i64: 1, 128>}, {pipeline_mode = #tpu.pipeline_mode<synchronous>, transform_indices = @transform_4, window_bounds = array<i64: 384, 256>}, {pipeline_mode = #tpu.pipeline_mode<synchronous>, transform_indices = @transform_5, window_bounds = array<i64: 1, 256>}, {transform_indices = @transform_6, window_bounds = array<i64: 8, 8, 128>}]} {
    %c0 = arith.constant 0 : index
    %c0_0 = arith.constant 0 : index
    %c0_1 = arith.constant 0 : index
    %0 = vector.load %arg1[%c0, %c0_0, %c0_1] : memref<8x8x128xf32, #tpu.memory_space<vmem>>, vector<8x8x128xf32>
    %1 = vector.shape_cast %0 : vector<8x8x128xf32> to vector<64x128xf32>
    %c0_2 = arith.constant 0 : index
    %c0_3 = arith.constant 0 : index
    %2 = vector.load %arg2[%c0_2, %c0_3] : memref<128x128xf32, #tpu.memory_space<vmem>>, vector<128x128xf32>
    %cst = arith.constant dense<0.000000e+00> : vector<64x128xf32>
    %3 = tpu.matmul %1, %2, %cst {dimension_numbers = #tpu.dot_dimension_numbers<[1], [0], [0], [1], [0, 0, 1, 1], [], []>} : vector<64x128xf32>, vector<128x128xf32>, vector<64x128xf32> -> vector<64x128xf32>
    %c0_4 = arith.constant 0 : index
    %c0_5 = arith.constant 0 : index
    %4 = vector.load %arg4[%c0_4, %c0_5] : memref<1x128xf32, #tpu.memory_space<vmem>>, vector<1x128xf32>
    %5 = vector.broadcast %4 : vector<1x128xf32> to vector<64x128xf32>
    %6 = arith.addf %3, %5 : vector<64x128xf32>
    %7 = vector.shape_cast %6 : vector<64x128xf32> to vector<8x8x128xf32>
    %c0_6 = arith.constant 0 : index
    %c0_7 = arith.constant 0 : index
    %c0_8 = arith.constant 0 : index
    %8 = vector.load %arg7[%c0_6, %c0_7, %c0_8] : memref<8x8x128xf32, #tpu.memory_space<vmem>>, vector<8x8x128xf32>
    tpu.vector_store %arg7[%c0_6, %c0_7, %c0_8], %7 {strides = array<i32>} : memref<8x8x128xf32, #tpu.memory_space<vmem>>, vector<8x8x128xf32>,
    %cst_9 = arith.constant 0.000000e+00 : f32
    %9 = vector.broadcast %cst_9 : f32 to vector<1x8x128xf32>
    %c0_10 = arith.constant 0 : index
    %c0_11 = arith.constant 0 : index
    %c0_12 = arith.constant 0 : index
    %10 = vector.load %arg8[%c0_10, %c0_11, %c0_12] : memref<10x8x128xf32, #tpu.memory_space<vmem>>, vector<1x8x128xf32>
    tpu.vector_store %arg8[%c0_10, %c0_11, %c0_12], %9 {strides = array<i32>} : memref<10x8x128xf32, #tpu.memory_space<vmem>>, vector<1x8x128xf32>,
    %cst_13 = arith.constant 0.000000e+00 : f32
    %11 = vector.broadcast %cst_13 : f32 to vector<1x8x128xf32>
    %c9 = arith.constant 9 : index
    %c0_14 = arith.constant 0 : index
    %c0_15 = arith.constant 0 : index
    %12 = vector.load %arg8[%c9, %c0_14, %c0_15] : memref<10x8x128xf32, #tpu.memory_space<vmem>>, vector<1x8x128xf32>
    tpu.vector_store %arg8[%c9, %c0_14, %c0_15], %11 {strides = array<i32>} : memref<10x8x128xf32, #tpu.memory_space<vmem>>, vector<1x8x128xf32>,
    %c0_16 = arith.constant 0 : index
    %c0_17 = arith.constant 0 : index
    %13 = vector.load %arg3[%c0_16, %c0_17] : memref<128x128xf32, #tpu.memory_space<vmem>>, vector<128x128xf32>
    %cst_18 = arith.constant 0.000000e+00 : f32
    %14 = vector.broadcast %cst_18 : f32 to vector<8x128xf32>
    %c0_i32 = arith.constant 0 : i32
    %15 = arith.index_cast %c0_i32 : i32 to index
    %c0_19 = arith.constant 0 : index
    %c0_20 = arith.constant 0 : index
    %16 = vector.load %arg7[%15, %c0_19, %c0_20] : memref<8x8x128xf32, #tpu.memory_space<vmem>>, vector<1x8x128xf32>
    %17 = vector.shape_cast %16 : vector<1x8x128xf32> to vector<8x128xf32>
    %cst_21 = arith.constant dense<0.000000e+00> : vector<8x128xf32>
    %18 = tpu.matmul %14, %13, %cst_21 {dimension_numbers = #tpu.dot_dimension_numbers<[1], [0], [0], [1], [0, 0, 1, 1], [], []>} : vector<8x128xf32>, vector<128x128xf32>, vector<8x128xf32> -> vector<8x128xf32>
    %19 = arith.addf %17, %18 : vector<8x128xf32>
    %20 = math.tanh %19 : vector<8x128xf32>
    %c1_i32 = arith.constant 1 : i32
    %21 = arith.addi %c0_i32, %c1_i32 : i32
    %22 = arith.index_cast %21 : i32 to index
    %c0_22 = arith.constant 0 : index
    %c0_23 = arith.constant 0 : index
    %23 = vector.load %arg8[%22, %c0_22, %c0_23] : memref<10x8x128xf32, #tpu.memory_space<vmem>>, vector<1x8x128xf32>
    %24 = vector.shape_cast %23 : vector<1x8x128xf32> to vector<8x128xf32>
    %25 = vector.shape_cast %20 : vector<8x128xf32> to vector<1x8x128xf32>
    tpu.vector_store %arg8[%22, %c0_22, %c0_23], %25 {strides = array<i32>} : memref<10x8x128xf32, #tpu.memory_space<vmem>>, vector<1x8x128xf32>,
    %c1_i32_24 = arith.constant 1 : i32
    %26 = arith.index_cast %c1_i32_24 : i32 to index
    %c0_25 = arith.constant 0 : index
    %c0_26 = arith.constant 0 : index
    %27 = vector.load %arg7[%26, %c0_25, %c0_26] : memref<8x8x128xf32, #tpu.memory_space<vmem>>, vector<1x8x128xf32>
    %28 = vector.shape_cast %27 : vector<1x8x128xf32> to vector<8x128xf32>
    %cst_27 = arith.constant dense<0.000000e+00> : vector<8x128xf32>
    %29 = tpu.matmul %20, %13, %cst_27 {dimension_numbers = #tpu.dot_dimension_numbers<[1], [0], [0], [1], [0, 0, 1, 1], [], []>} : vector<8x128xf32>, vector<128x128xf32>, vector<8x128xf32> -> vector<8x128xf32>
    %30 = arith.addf %28, %29 : vector<8x128xf32>
    %31 = math.tanh %30 : vector<8x128xf32>
    %c1_i32_28 = arith.constant 1 : i32
    %32 = arith.addi %c1_i32_24, %c1_i32_28 : i32
    %33 = arith.index_cast %32 : i32 to index
    %c0_29 = arith.constant 0 : index
    %c0_30 = arith.constant 0 : index
    %34 = vector.load %arg8[%33, %c0_29, %c0_30] : memref<10x8x128xf32, #tpu.memory_space<vmem>>, vector<1x8x128xf32>
    %35 = vector.shape_cast %34 : vector<1x8x128xf32> to vector<8x128xf32>
    %36 = vector.shape_cast %31 : vector<8x128xf32> to vector<1x8x128xf32>
    tpu.vector_store %arg8[%33, %c0_29, %c0_30], %36 {strides = array<i32>} : memref<10x8x128xf32, #tpu.memory_space<vmem>>, vector<1x8x128xf32>,
    %c2_i32 = arith.constant 2 : i32
    %37 = arith.index_cast %c2_i32 : i32 to index
    %c0_31 = arith.constant 0 : index
    %c0_32 = arith.constant 0 : index
    %38 = vector.load %arg7[%37, %c0_31, %c0_32] : memref<8x8x128xf32, #tpu.memory_space<vmem>>, vector<1x8x128xf32>
    %39 = vector.shape_cast %38 : vector<1x8x128xf32> to vector<8x128xf32>
    %cst_33 = arith.constant dense<0.000000e+00> : vector<8x128xf32>
    %40 = tpu.matmul %31, %13, %cst_33 {dimension_numbers = #tpu.dot_dimension_numbers<[1], [0], [0], [1], [0, 0, 1, 1], [], []>} : vector<8x128xf32>, vector<128x128xf32>, vector<8x128xf32> -> vector<8x128xf32>
    %41 = arith.addf %39, %40 : vector<8x128xf32>
    %42 = math.tanh %41 : vector<8x128xf32>
    %c1_i32_34 = arith.constant 1 : i32
    %43 = arith.addi %c2_i32, %c1_i32_34 : i32
    %44 = arith.index_cast %43 : i32 to index
    %c0_35 = arith.constant 0 : index
    %c0_36 = arith.constant 0 : index
    %45 = vector.load %arg8[%44, %c0_35, %c0_36] : memref<10x8x128xf32, #tpu.memory_space<vmem>>, vector<1x8x128xf32>
    %46 = vector.shape_cast %45 : vector<1x8x128xf32> to vector<8x128xf32>
    %47 = vector.shape_cast %42 : vector<8x128xf32> to vector<1x8x128xf32>
    tpu.vector_store %arg8[%44, %c0_35, %c0_36], %47 {strides = array<i32>} : memref<10x8x128xf32, #tpu.memory_space<vmem>>, vector<1x8x128xf32>,
    %c3_i32 = arith.constant 3 : i32
    %48 = arith.index_cast %c3_i32 : i32 to index
    %c0_37 = arith.constant 0 : index
    %c0_38 = arith.constant 0 : index
    %49 = vector.load %arg7[%48, %c0_37, %c0_38] : memref<8x8x128xf32, #tpu.memory_space<vmem>>, vector<1x8x128xf32>
    %50 = vector.shape_cast %49 : vector<1x8x128xf32> to vector<8x128xf32>
    %cst_39 = arith.constant dense<0.000000e+00> : vector<8x128xf32>
    %51 = tpu.matmul %42, %13, %cst_39 {dimension_numbers = #tpu.dot_dimension_numbers<[1], [0], [0], [1], [0, 0, 1, 1], [], []>} : vector<8x128xf32>, vector<128x128xf32>, vector<8x128xf32> -> vector<8x128xf32>
    %52 = arith.addf %50, %51 : vector<8x128xf32>
    %53 = math.tanh %52 : vector<8x128xf32>
    %c1_i32_40 = arith.constant 1 : i32
    %54 = arith.addi %c3_i32, %c1_i32_40 : i32
    %55 = arith.index_cast %54 : i32 to index
    %c0_41 = arith.constant 0 : index
    %c0_42 = arith.constant 0 : index
    %56 = vector.load %arg8[%55, %c0_41, %c0_42] : memref<10x8x128xf32, #tpu.memory_space<vmem>>, vector<1x8x128xf32>
    %57 = vector.shape_cast %56 : vector<1x8x128xf32> to vector<8x128xf32>
    %58 = vector.shape_cast %53 : vector<8x128xf32> to vector<1x8x128xf32>
    tpu.vector_store %arg8[%55, %c0_41, %c0_42], %58 {strides = array<i32>} : memref<10x8x128xf32, #tpu.memory_space<vmem>>, vector<1x8x128xf32>,
    %c4_i32 = arith.constant 4 : i32
    %59 = arith.index_cast %c4_i32 : i32 to index
    %c0_43 = arith.constant 0 : index
    %c0_44 = arith.constant 0 : index
    %60 = vector.load %arg7[%59, %c0_43, %c0_44] : memref<8x8x128xf32, #tpu.memory_space<vmem>>, vector<1x8x128xf32>
    %61 = vector.shape_cast %60 : vector<1x8x128xf32> to vector<8x128xf32>
    %cst_45 = arith.constant dense<0.000000e+00> : vector<8x128xf32>
    %62 = tpu.matmul %53, %13, %cst_45 {dimension_numbers = #tpu.dot_dimension_numbers<[1], [0], [0], [1], [0, 0, 1, 1], [], []>} : vector<8x128xf32>, vector<128x128xf32>, vector<8x128xf32> -> vector<8x128xf32>
    %63 = arith.addf %61, %62 : vector<8x128xf32>
    %64 = math.tanh %63 : vector<8x128xf32>
    %c1_i32_46 = arith.constant 1 : i32
    %65 = arith.addi %c4_i32, %c1_i32_46 : i32
    %66 = arith.index_cast %65 : i32 to index
    %c0_47 = arith.constant 0 : index
    %c0_48 = arith.constant 0 : index
    %67 = vector.load %arg8[%66, %c0_47, %c0_48] : memref<10x8x128xf32, #tpu.memory_space<vmem>>, vector<1x8x128xf32>
    %68 = vector.shape_cast %67 : vector<1x8x128xf32> to vector<8x128xf32>
    %69 = vector.shape_cast %64 : vector<8x128xf32> to vector<1x8x128xf32>
    tpu.vector_store %arg8[%66, %c0_47, %c0_48], %69 {strides = array<i32>} : memref<10x8x128xf32, #tpu.memory_space<vmem>>, vector<1x8x128xf32>,
    %c5_i32 = arith.constant 5 : i32
    %70 = arith.index_cast %c5_i32 : i32 to index
    %c0_49 = arith.constant 0 : index
    %c0_50 = arith.constant 0 : index
    %71 = vector.load %arg7[%70, %c0_49, %c0_50] : memref<8x8x128xf32, #tpu.memory_space<vmem>>, vector<1x8x128xf32>
    %72 = vector.shape_cast %71 : vector<1x8x128xf32> to vector<8x128xf32>
    %cst_51 = arith.constant dense<0.000000e+00> : vector<8x128xf32>
    %73 = tpu.matmul %64, %13, %cst_51 {dimension_numbers = #tpu.dot_dimension_numbers<[1], [0], [0], [1], [0, 0, 1, 1], [], []>} : vector<8x128xf32>, vector<128x128xf32>, vector<8x128xf32> -> vector<8x128xf32>
    %74 = arith.addf %72, %73 : vector<8x128xf32>
    %75 = math.tanh %74 : vector<8x128xf32>
    %c1_i32_52 = arith.constant 1 : i32
    %76 = arith.addi %c5_i32, %c1_i32_52 : i32
    %77 = arith.index_cast %76 : i32 to index
    %c0_53 = arith.constant 0 : index
    %c0_54 = arith.constant 0 : index
    %78 = vector.load %arg8[%77, %c0_53, %c0_54] : memref<10x8x128xf32, #tpu.memory_space<vmem>>, vector<1x8x128xf32>
    %79 = vector.shape_cast %78 : vector<1x8x128xf32> to vector<8x128xf32>
    %80 = vector.shape_cast %75 : vector<8x128xf32> to vector<1x8x128xf32>
    tpu.vector_store %arg8[%77, %c0_53, %c0_54], %80 {strides = array<i32>} : memref<10x8x128xf32, #tpu.memory_space<vmem>>, vector<1x8x128xf32>,
    %c6_i32 = arith.constant 6 : i32
    %81 = arith.index_cast %c6_i32 : i32 to index
    %c0_55 = arith.constant 0 : index
    %c0_56 = arith.constant 0 : index
    %82 = vector.load %arg7[%81, %c0_55, %c0_56] : memref<8x8x128xf32, #tpu.memory_space<vmem>>, vector<1x8x128xf32>
    %83 = vector.shape_cast %82 : vector<1x8x128xf32> to vector<8x128xf32>
    %cst_57 = arith.constant dense<0.000000e+00> : vector<8x128xf32>
    %84 = tpu.matmul %75, %13, %cst_57 {dimension_numbers = #tpu.dot_dimension_numbers<[1], [0], [0], [1], [0, 0, 1, 1], [], []>} : vector<8x128xf32>, vector<128x128xf32>, vector<8x128xf32> -> vector<8x128xf32>
    %85 = arith.addf %83, %84 : vector<8x128xf32>
    %86 = math.tanh %85 : vector<8x128xf32>
    %c1_i32_58 = arith.constant 1 : i32
    %87 = arith.addi %c6_i32, %c1_i32_58 : i32
    %88 = arith.index_cast %87 : i32 to index
    %c0_59 = arith.constant 0 : index
    %c0_60 = arith.constant 0 : index
    %89 = vector.load %arg8[%88, %c0_59, %c0_60] : memref<10x8x128xf32, #tpu.memory_space<vmem>>, vector<1x8x128xf32>
    %90 = vector.shape_cast %89 : vector<1x8x128xf32> to vector<8x128xf32>
    %91 = vector.shape_cast %86 : vector<8x128xf32> to vector<1x8x128xf32>
    tpu.vector_store %arg8[%88, %c0_59, %c0_60], %91 {strides = array<i32>} : memref<10x8x128xf32, #tpu.memory_space<vmem>>, vector<1x8x128xf32>,
    %c7_i32 = arith.constant 7 : i32
    %92 = arith.index_cast %c7_i32 : i32 to index
    %c0_61 = arith.constant 0 : index
    %c0_62 = arith.constant 0 : index
    %93 = vector.load %arg7[%92, %c0_61, %c0_62] : memref<8x8x128xf32, #tpu.memory_space<vmem>>, vector<1x8x128xf32>
    %94 = vector.shape_cast %93 : vector<1x8x128xf32> to vector<8x128xf32>
    %cst_63 = arith.constant dense<0.000000e+00> : vector<8x128xf32>
    %95 = tpu.matmul %86, %13, %cst_63 {dimension_numbers = #tpu.dot_dimension_numbers<[1], [0], [0], [1], [0, 0, 1, 1], [], []>} : vector<8x128xf32>, vector<128x128xf32>, vector<8x128xf32> -> vector<8x128xf32>
    %96 = arith.addf %94, %95 : vector<8x128xf32>
    %97 = math.tanh %96 : vector<8x128xf32>
    %c1_i32_64 = arith.constant 1 : i32
    %98 = arith.addi %c7_i32, %c1_i32_64 : i32
    %99 = arith.index_cast %98 : i32 to index
    %c0_65 = arith.constant 0 : index
    %c0_66 = arith.constant 0 : index
    %100 = vector.load %arg8[%99, %c0_65, %c0_66] : memref<10x8x128xf32, #tpu.memory_space<vmem>>, vector<1x8x128xf32>
    %101 = vector.shape_cast %100 : vector<1x8x128xf32> to vector<8x128xf32>
    %102 = vector.shape_cast %97 : vector<8x128xf32> to vector<1x8x128xf32>
    tpu.vector_store %arg8[%99, %c0_65, %c0_66], %102 {strides = array<i32>} : memref<10x8x128xf32, #tpu.memory_space<vmem>>, vector<1x8x128xf32>,
    %c8_i32 = arith.constant 8 : i32
    %c0_67 = arith.constant 0 : index
    %c0_68 = arith.constant 0 : index
    %c0_69 = arith.constant 0 : index
    %103 = vector.load %arg8[%c0_67, %c0_68, %c0_69] : memref<10x8x128xf32, #tpu.memory_space<vmem>>, vector<8x8x128xf32>
    %104 = vector.shape_cast %103 : vector<8x8x128xf32> to vector<64x128xf32>
    %c1 = arith.constant 1 : index
    %c0_70 = arith.constant 0 : index
    %c0_71 = arith.constant 0 : index
    %105 = vector.load %arg8[%c1, %c0_70, %c0_71] : memref<10x8x128xf32, #tpu.memory_space<vmem>>, vector<8x8x128xf32>
    %106 = vector.shape_cast %105 : vector<8x8x128xf32> to vector<64x128xf32>
    %c2 = arith.constant 2 : index
    %c0_72 = arith.constant 0 : index
    %c0_73 = arith.constant 0 : index
    %107 = vector.load %arg8[%c2, %c0_72, %c0_73] : memref<10x8x128xf32, #tpu.memory_space<vmem>>, vector<8x8x128xf32>
    %108 = vector.shape_cast %107 : vector<8x8x128xf32> to vector<64x128xf32>
    %109 = tpu.concatenate %104, %106, %108 in 1 : vector<64x128xf32>, vector<64x128xf32>, vector<64x128xf32> -> vector<64x384xf32>
    %c0_74 = arith.constant 0 : index
    %c0_75 = arith.constant 0 : index
    %110 = vector.load %arg5[%c0_74, %c0_75] : memref<384x256xf32, #tpu.memory_space<vmem>>, vector<384x256xf32>
    %cst_76 = arith.constant dense<0.000000e+00> : vector<64x256xf32>
    %111 = tpu.matmul %109, %110, %cst_76 {dimension_numbers = #tpu.dot_dimension_numbers<[1], [0], [0], [1], [0, 0, 1, 1], [], []>} : vector<64x384xf32>, vector<384x256xf32>, vector<64x256xf32> -> vector<64x256xf32>
    %c0_77 = arith.constant 0 : index
    %c0_78 = arith.constant 0 : index
    %112 = vector.load %arg6[%c0_77, %c0_78] : memref<1x256xf32, #tpu.memory_space<vmem>>, vector<1x256xf32>
    %113 = vector.broadcast %112 : vector<1x256xf32> to vector<64x256xf32>
    %114 = arith.addf %111, %113 : vector<64x256xf32>
    %115 = vector.extract_strided_slice %114 {offsets = [0, 0], sizes = [64, 128], strides = [1, 1]} : vector<64x256xf32> to vector<64x128xf32>
    %116 = vector.extract_strided_slice %114 {offsets = [0, 128], sizes = [64, 128], strides = [1, 1]} : vector<64x256xf32> to vector<64x128xf32>
    %117 = arith.negf %116 : vector<64x128xf32>
    %118 = math.exp %117 : vector<64x128xf32>
    %cst_79 = arith.constant 1.000000e+00 : f32
    %119 = vector.broadcast %cst_79 : f32 to vector<64x128xf32>
    %120 = arith.addf %119, %118 : vector<64x128xf32>
    %121 = arith.divf %119, %120 : vector<64x128xf32>
    %122 = arith.mulf %115, %121 : vector<64x128xf32>
    %123 = vector.shape_cast %122 : vector<64x128xf32> to vector<8x8x128xf32>
    %c0_80 = arith.constant 0 : index
    %c0_81 = arith.constant 0 : index
    %c0_82 = arith.constant 0 : index
    %124 = vector.load %arg7[%c0_80, %c0_81, %c0_82] : memref<8x8x128xf32, #tpu.memory_space<vmem>>, vector<8x8x128xf32>
    tpu.vector_store %arg7[%c0_80, %c0_81, %c0_82], %123 {strides = array<i32>} : memref<8x8x128xf32, #tpu.memory_space<vmem>>, vector<8x8x128xf32>,
    return
  }
  func.func @transform_0(%arg0: i32) -> (i32, i32, i32) {
    %c0_i32 = arith.constant 0 : i32
    %c0_i32_0 = arith.constant 0 : i32
    %c0_i32_1 = arith.constant 0 : i32
    return %c0_i32, %arg0, %c0_i32_0 : i32, i32, i32
  }
  func.func @transform_1(%arg0: i32) -> (i32, i32) {
    %c0_i32 = arith.constant 0 : i32
    %c0_i32_0 = arith.constant 0 : i32
    %c0_i32_1 = arith.constant 0 : i32
    return %c0_i32, %c0_i32_0 : i32, i32
  }
  func.func @transform_2(%arg0: i32) -> (i32, i32) {
    %c0_i32 = arith.constant 0 : i32
    %c0_i32_0 = arith.constant 0 : i32
    %c0_i32_1 = arith.constant 0 : i32
    return %c0_i32, %c0_i32_0 : i32, i32
  }
  func.func @transform_3(%arg0: i32) -> (i32, i32) {
    %c0_i32 = arith.constant 0 : i32
    %c0_i32_0 = arith.constant 0 : i32
    %c0_i32_1 = arith.constant 0 : i32
    return %c0_i32, %c0_i32_0 : i32, i32
  }
  func.func @transform_4(%arg0: i32) -> (i32, i32) {
    %c0_i32 = arith.constant 0 : i32
    %c0_i32_0 = arith.constant 0 : i32
    %c0_i32_1 = arith.constant 0 : i32
    return %c0_i32, %c0_i32_0 : i32, i32
  }
  func.func @transform_5(%arg0: i32) -> (i32, i32) {
    %c0_i32 = arith.constant 0 : i32
    %c0_i32_0 = arith.constant 0 : i32
    %c0_i32_1 = arith.constant 0 : i32
    return %c0_i32, %c0_i32_0 : i32, i32
  }
  func.func @transform_6(%arg0: i32) -> (i32, i32, i32) {
    %c0_i32 = arith.constant 0 : i32
    %c0_i32_0 = arith.constant 0 : i32
    %c0_i32_1 = arith.constant 0 : i32
    return %c0_i32, %arg0, %c0_i32_0 : i32, i32, i32
  }
}

</mosaic_0001>

<llo_original>
// kernel: tpu_custom_call.1
$region0: #{tpu_custom_call.1}
  #allocation0 [shape = 'u32[]', space=smem, size = 0x4, offset = 0x4, fixed_abs, tag = 'smem constant byte address 0x4 - core index']
  #allocation1 [shape = 'u32[72,128]{1,0:T(1,128)}', space=vmem, size = 0x9000, scoped, tag = 'internal scratch']
  #allocation2 [shape = 'f32[10,8,128]{2,1,0:T(8,128)}', space=vmem, size = 0xa000, scoped, tag = 'scratch operand']
  %s0 = inlined_call_operand.hbm [shape: f32[8,8,128], index: 0, kind: input, shape index: {}]
  %s1 = inlined_call_operand.hbm [shape: f32[128,128], index: 1, kind: input, shape index: {}]
  %s2 = inlined_call_operand.hbm [shape: f32[128,128], index: 2, kind: input, shape index: {}]
  %s3 = inlined_call_operand.vmem [shape: f32[1,128], index: 3, kind: input, shape index: {}]
  %s4 = inlined_call_operand.hbm [shape: f32[384,256], index: 4, kind: input, shape index: {}]
  %s5 = inlined_call_operand.vmem [shape: f32[1,256], index: 5, kind: input, shape index: {}]
  %s6 = inlined_call_operand.hbm [shape: f32[8,8,128], index: 6, kind: output, shape index: {}]
  %s7 = sld [smem:[#allocation0]]
  $region50: #{tpu_custom_call.1} parent=0
    _
  %s9 = ssub.s32 1, %s7
  %s10 = scalar_select 0, %s9, %s7
  $region1: #{tpu_custom_call.1} parent=0
    #allocation3 [shape = 'u8[32768]{0}', space=vmem, size = 0x8000, scoped, tag = 'input window, operand 0, single buffered']
    #allocation4 [shape = 's32[1]{0}', space=sflag, size = 0x4, scoped, tag = 'scoped memory for tpu_custom_call.1']
    #allocation5 [shape = 's32[1]{0}', space=sflag, size = 0x4, scoped, tag = 'scoped memory for tpu_custom_call.1']
    #allocation6 [shape = 'u8[65536]{0}', space=vmem, size = 0x10000, scoped, tag = 'input window, operand 1, single buffered']
    #allocation7 [shape = 's32[1]{0}', space=sflag, size = 0x4, scoped, tag = 'scoped memory for tpu_custom_call.1']
    #allocation8 [shape = 'u8[65536]{0}', space=vmem, size = 0x10000, scoped, tag = 'input window, operand 2, single buffered']
    #allocation9 [shape = 'u8[393216]{0}', space=vmem, size = 0x60000, scoped, tag = 'input window, operand 4, single buffered']
    #allocation10 [shape = 's32[1]{0}', space=sflag, size = 0x4, scoped, tag = 'scoped memory for tpu_custom_call.1']
    #allocation11 [shape = 'u8[32768]{0}', space=vmem, size = 0x8000, scoped, tag = 'output window, operand 0, single buffered']
    %11 = vsyncpa [#allocation4], 0
    %12 = vsyncpa [#allocation7], 0
    %13 = vsyncpa [#allocation10], 0
    %14 = vsyncpa [#allocation5], 0
    // Predicated region
    $region2: #{tpu_custom_call.1} parent=1 // pred_check
      _
    $region3: #{tpu_custom_call.1} parent=1 // pred_check_branch
      %16 = sbr.rel (0) target = $region5
    $region4: #{tpu_custom_call.1} parent=1 // pred_region
      %18 = vsyncadd [#allocation4], 0
      %s19 = sshll.u32 %s0, 4
      %s20 = int_to_ptr.hbm [resolvable:$true] %s19
      %s21 = sshll.u32 [#allocation3], 4
      %s22 = int_to_ptr.vmem [resolvable:$true] %s21
      %27 = dma.hbm_to_vmem [thread:$0]  %s20, 1024, %s22, [#allocation4], 128, 128, 8
    $region5: #{tpu_custom_call.1} parent=1 // pred_fallthru
      _
    // Predicated region
    $region6: #{tpu_custom_call.1} parent=1 // pred_check
      _
    $region7: #{tpu_custom_call.1} parent=1 // pred_check_branch
      %29 = sbr.rel (0) target = $region9
    $region8: #{tpu_custom_call.1} parent=1 // pred_region
      %31 = vsyncadd [#allocation7], 0
      %s32 = sshll.u32 %s1, 4
      %s33 = int_to_ptr.hbm [resolvable:$true] %s32
      %s34 = sshll.u32 [#allocation6], 4
      %s35 = int_to_ptr.vmem [resolvable:$true] %s34
      %40 = dma.hbm_to_vmem [thread:$0]  %s33, 2048, %s35, [#allocation7], 128, 128, 8
    $region9: #{tpu_custom_call.1} parent=1 // pred_fallthru
      _
    // Predicated region
    $region10: #{tpu_custom_call.1} parent=1 // pred_check
      _
    $region11: #{tpu_custom_call.1} parent=1 // pred_check_branch
      %42 = sbr.rel (0) target = $region13
    $region12: #{tpu_custom_call.1} parent=1 // pred_region
      %44 = vsyncadd [#allocation7], 0
      %s45 = sshll.u32 %s2, 4
      %s46 = int_to_ptr.hbm [resolvable:$true] %s45
      %s47 = sshll.u32 [#allocation8], 4
      %s48 = int_to_ptr.vmem [resolvable:$true] %s47
      %53 = dma.hbm_to_vmem [thread:$0]  %s46, 2048, %s48, [#allocation7], 128, 128, 8
    $region13: #{tpu_custom_call.1} parent=1 // pred_fallthru
      _
    // Predicated region
    $region14: #{tpu_custom_call.1} parent=1 // pred_check
      _
    $region15: #{tpu_custom_call.1} parent=1 // pred_check_branch
      %55 = sbr.rel (0) target = $region17
    $region16: #{tpu_custom_call.1} parent=1 // pred_region
      _
    $region17: #{tpu_custom_call.1} parent=1 // pred_fallthru
      _
    // Predicated region
    $region18: #{tpu_custom_call.1} parent=1 // pred_check
      _
    $region19: #{tpu_custom_call.1} parent=1 // pred_check_branch
      %57 = sbr.rel (0) target = $region21
    $region20: #{tpu_custom_call.1} parent=1 // pred_region
      %59 = vsyncadd [#allocation10], 0
      %s60 = sshll.u32 %s4, 4
      %s61 = int_to_ptr.hbm [resolvable:$true] %s60
      %s62 = sshll.u32 [#allocation9], 4
      %s63 = int_to_ptr.vmem [resolvable:$true] %s62
      %68 = dma.hbm_to_vmem [thread:$0]  %s61, 12288, %s63, [#allocation10], 256, 256, 16
    $region21: #{tpu_custom_call.1} parent=1 // pred_fallthru
      _
    // Predicated region
    $region22: #{tpu_custom_call.1} parent=1 // pred_check
      _
    $region23: #{tpu_custom_call.1} parent=1 // pred_check_branch
      %70 = sbr.rel (0) target = $region25
    $region24: #{tpu_custom_call.1} parent=1 // pred_region
      _
    $region25: #{tpu_custom_call.1} parent=1 // pred_fallthru
      _
    // Predicated region
    $region26: #{tpu_custom_call.1} parent=1 // pred_check
      _
    $region27: #{tpu_custom_call.1} parent=1 // pred_check_branch
      %72 = sbr.rel (0) target = $region29
    $region28: #{tpu_custom_call.1} parent=1 // pred_region
      %74 = dma.done [#allocation4], 1024
    $region29: #{tpu_custom_call.1} parent=1 // pred_fallthru
      _
    // Predicated region
    $region30: #{tpu_custom_call.1} parent=1 // pred_check
      _
    $region31: #{tpu_custom_call.1} parent=1 // pred_check_branch
      %76 = sbr.rel (0) target = $region33
    $region32: #{tpu_custom_call.1} parent=1 // pred_region
      %78 = dma.done [#allocation7], 2048
    $region33: #{tpu_custom_call.1} parent=1 // pred_fallthru
      _
    // Predicated region
    $region34: #{tpu_custom_call.1} parent=1 // pred_check
      _
    $region35: #{tpu_custom_call.1} parent=1 // pred_check_branch
      %80 = sbr.rel (0) target = $region37
    $region36: #{tpu_custom_call.1} parent=1 // pred_region
      %82 = dma.done [#allocation7], 2048
    $region37: #{tpu_custom_call.1} parent=1 // pred_fallthru
      _
    // Predicated region
    $region38: #{tpu_custom_call.1} parent=1 // pred_check
      _
    $region39: #{tpu_custom_call.1} parent=1 // pred_check_branch
      %84 = sbr.rel (0) target = $region41
    $region40: #{tpu_custom_call.1} parent=1 // pred_region
      %86 = dma.done [#allocation10], 12288
    $region41: #{tpu_custom_call.1} parent=1 // pred_fallthru
      _
    %v87 = vld [vmem:[#allocation3] sm:$0xff]
    %v88 = vld [vmem:[#allocation3 + $0x8] sm:$0xff]
    %v89 = vld [vmem:[#allocation3 + $0x10] sm:$0xff]
    %v90 = vld [vmem:[#allocation3 + $0x18] sm:$0xff]
    %v91 = vld [vmem:[#allocation3 + $0x20] sm:$0xff]
    %v92 = vld [vmem:[#allocation3 + $0x28] sm:$0xff]
    %v93 = vld [vmem:[#allocation3 + $0x30] sm:$0xff]
    %v94 = vld [vmem:[#allocation3 + $0x38] sm:$0xff]
    %v95 = vld [vmem:[#allocation6] sm:$0xff]
    %v96 = vld [vmem:[#allocation6 + $0x8] sm:$0xff]
    %v97 = vld [vmem:[#allocation6 + $0x10] sm:$0xff]
    %v98 = vld [vmem:[#allocation6 + $0x18] sm:$0xff]
    %v99 = vld [vmem:[#allocation6 + $0x20] sm:$0xff]
    %v100 = vld [vmem:[#allocation6 + $0x28] sm:$0xff]
    %v101 = vld [vmem:[#allocation6 + $0x30] sm:$0xff]
    %v102 = vld [vmem:[#allocation6 + $0x38] sm:$0xff]
    %v103 = vld [vmem:[#allocation6 + $0x40] sm:$0xff]
    %v104 = vld [vmem:[#allocation6 + $0x48] sm:$0xff]
    %v105 = vld [vmem:[#allocation6 + $0x50] sm:$0xff]
    %v106 = vld [vmem:[#allocation6 + $0x58] sm:$0xff]
    %v107 = vld [vmem:[#allocation6 + $0x60] sm:$0xff]
    %v108 = vld [vmem:[#allocation6 + $0x68] sm:$0xff]
    %v109 = vld [vmem:[#allocation6 + $0x70] sm:$0xff]
    %v110 = vld [vmem:[#allocation6 + $0x78] sm:$0xff]
    %v111 = vld [vmem:[%s3] sm:$0x1]
    %v113 = vperm.slane %v111, 0
    %115 = vmatpush.msra.mxu0 %v110
    %116 = vmatpush.msra.mxu0 %v109
    %117 = vmatpush.msra.mxu0 %v108
    %118 = vmatpush.msra.mxu0 %v107
    %119 = vmatpush.msra.mxu0 %v106
    %120 = vmatpush.msra.mxu0 %v105
    %121 = vmatpush.msra.mxu0 %v104
    %122 = vmatpush.msra.mxu0 %v103
    %123 = vmatpush.msra.mxu0 %v102
    %124 = vmatpush.msra.mxu0 %v101
    %125 = vmatpush.msra.mxu0 %v100
    %126 = vmatpush.msra.mxu0 %v99
    %127 = vmatpush.msra.mxu0 %v98
    %128 = vmatpush.msra.mxu0 %v97
    %129 = vmatpush.msra.mxu0 %v96
    %130 = vmatpush.msra.mxu0 %v95
    %131 = vmatmul.f32.gmra.mxu0 %v87
    %v132 = vpop.f32.mrf.mxu0
    %v133 = vadd.f32 %v113, %v132
    %134 = vmatmul.f32.gmra.mxu0 %v88
    %v135 = vpop.f32.mrf.mxu0
    %v136 = vadd.f32 %v113, %v135
    %137 = vmatmul.f32.gmra.mxu0 %v89
    %v138 = vpop.f32.mrf.mxu0
    %v139 = vadd.f32 %v113, %v138
    %140 = vmatmul.f32.gmra.mxu0 %v90
    %v141 = vpop.f32.mrf.mxu0
    %v142 = vadd.f32 %v113, %v141
    %143 = vmatmul.f32.gmra.mxu0 %v91
    %v144 = vpop.f32.mrf.mxu0
    %v145 = vadd.f32 %v113, %v144
    %146 = vmatmul.f32.gmra.mxu0 %v92
    %v147 = vpop.f32.mrf.mxu0
    %v148 = vadd.f32 %v113, %v147
    %149 = vmatmul.f32.gmra.mxu0 %v93
    %v150 = vpop.f32.mrf.mxu0
    %v151 = vadd.f32 %v113, %v150
    %152 = vmatmul.f32.gmra.mxu0 %v94
    %v153 = vpop.f32.mrf.mxu0
    %v154 = vadd.f32 %v113, %v153
    %155 = vdwg.mxu0
    %156 = vst [vmem:[#allocation11] sm:$0xff] %v133
    %157 = vst [vmem:[#allocation11 + $0x8] sm:$0xff] %v136
    %158 = vst [vmem:[#allocation11 + $0x10] sm:$0xff] %v139
    %159 = vst [vmem:[#allocation11 + $0x18] sm:$0xff] %v142
    %160 = vst [vmem:[#allocation11 + $0x20] sm:$0xff] %v145
    %161 = vst [vmem:[#allocation11 + $0x28] sm:$0xff] %v148
    %162 = vst [vmem:[#allocation11 + $0x30] sm:$0xff] %v151
    %163 = vst [vmem:[#allocation11 + $0x38] sm:$0xff] %v154
    %164 = vst [vmem:[#allocation2] sm:$0xff] 0.0
    %s165 = scalar_lea.vmem [#allocation2], 72
    %166 = vst [vmem:[%s165] sm:$0xff] 0.0
    %v167 = vld [vmem:[#allocation8] sm:$0xff]
    %v168 = vld [vmem:[#allocation8 + $0x8] sm:$0xff]
    %v169 = vld [vmem:[#allocation8 + $0x10] sm:$0xff]
    %v170 = vld [vmem:[#allocation8 + $0x18] sm:$0xff]
    %v171 = vld [vmem:[#allocation8 + $0x20] sm:$0xff]
    %v172 = vld [vmem:[#allocation8 + $0x28] sm:$0xff]
    %v173 = vld [vmem:[#allocation8 + $0x30] sm:$0xff]
    %v174 = vld [vmem:[#allocation8 + $0x38] sm:$0xff]
    %v175 = vld [vmem:[#allocation8 + $0x40] sm:$0xff]
    %v176 = vld [vmem:[#allocation8 + $0x48] sm:$0xff]
    %v177 = vld [vmem:[#allocation8 + $0x50] sm:$0xff]
    %v178 = vld [vmem:[#allocation8 + $0x58] sm:$0xff]
    %v179 = vld [vmem:[#allocation8 + $0x60] sm:$0xff]
    %v180 = vld [vmem:[#allocation8 + $0x68] sm:$0xff]
    %v181 = vld [vmem:[#allocation8 + $0x70] sm:$0xff]
    %v182 = vld [vmem:[#allocation8 + $0x78] sm:$0xff]
    %v183 = vld [vmem:[#allocation11] sm:$0xff]
    %184 = vmatpush.msra.mxu0 %v182
    %185 = vmatpush.msra.mxu0 %v181
    %186 = vmatpush.msra.mxu0 %v180
    %187 = vmatpush.msra.mxu0 %v179
    %188 = vmatpush.msra.mxu0 %v178
    %189 = vmatpush.msra.mxu0 %v177
    %190 = vmatpush.msra.mxu0 %v176
    %191 = vmatpush.msra.mxu0 %v175
    %192 = vmatpush.msra.mxu0 %v174
    %193 = vmatpush.msra.mxu0 %v173
    %194 = vmatpush.msra.mxu0 %v172
    %195 = vmatpush.msra.mxu0 %v171
    %196 = vmatpush.msra.mxu0 %v170
    %197 = vmatpush.msra.mxu0 %v169
    %198 = vmatpush.msra.mxu0 %v168
    %199 = vmatpush.msra.mxu0 %v167
    %200 = vmatmul.f32.gmra.mxu0 0.0
    %v201 = vpop.f32.mrf.mxu0
    %v202 = vadd.f32 0.0, %v201
    %203 = vdwg.mxu0
    %v204 = vadd.f32 %v183, %v202
    %v205 = vtanh.pop %v204
    %s206 = scalar_lea.vmem [#allocation2], 8
    %207 = vst [vmem:[%s206] sm:$0xff] %v205
    %s208 = scalar_lea.vmem [#allocation11], 8
    %v209 = vld [vmem:[%s208] sm:$0xff]
    %210 = vmatpush.msra.mxu0 %v182
    %211 = vmatpush.msra.mxu0 %v181
    %212 = vmatpush.msra.mxu0 %v180
    %213 = vmatpush.msra.mxu0 %v179
    %214 = vmatpush.msra.mxu0 %v178
    %215 = vmatpush.msra.mxu0 %v177
    %216 = vmatpush.msra.mxu0 %v176
    %217 = vmatpush.msra.mxu0 %v175
    %218 = vmatpush.msra.mxu0 %v174
    %219 = vmatpush.msra.mxu0 %v173
    %220 = vmatpush.msra.mxu0 %v172
    %221 = vmatpush.msra.mxu0 %v171
    %222 = vmatpush.msra.mxu0 %v170
    %223 = vmatpush.msra.mxu0 %v169
    %224 = vmatpush.msra.mxu0 %v168
    %225 = vmatpush.msra.mxu0 %v167
    %226 = vmatmul.f32.gmra.mxu0 %v205
    %v227 = vpop.f32.mrf.mxu0
    %v228 = vadd.f32 0.0, %v227
    %229 = vdwg.mxu0
    %v230 = vadd.f32 %v209, %v228
    %v231 = vtanh.pop %v230
    %s232 = scalar_lea.vmem [#allocation2], 16
    %233 = vst [vmem:[%s232] sm:$0xff] %v231
    %s234 = scalar_lea.vmem [#allocation11], 16
    %v235 = vld [vmem:[%s234] sm:$0xff]
    %236 = vmatpush.msra.mxu0 %v182
    %237 = vmatpush.msra.mxu0 %v181
    %238 = vmatpush.msra.mxu0 %v180
    %239 = vmatpush.msra.mxu0 %v179
    %240 = vmatpush.msra.mxu0 %v178
    %241 = vmatpush.msra.mxu0 %v177
    %242 = vmatpush.msra.mxu0 %v176
    %243 = vmatpush.msra.mxu0 %v175
    %244 = vmatpush.msra.mxu0 %v174
    %245 = vmatpush.msra.mxu0 %v173
    %246 = vmatpush.msra.mxu0 %v172
    %247 = vmatpush.msra.mxu0 %v171
    %248 = vmatpush.msra.mxu0 %v170
    %249 = vmatpush.msra.mxu0 %v169
    %250 = vmatpush.msra.mxu0 %v168
    %251 = vmatpush.msra.mxu0 %v167
    %252 = vmatmul.f32.gmra.mxu0 %v231
    %v253 = vpop.f32.mrf.mxu0
    %v254 = vadd.f32 0.0, %v253
    %255 = vdwg.mxu0
    %v256 = vadd.f32 %v235, %v254
    %v257 = vtanh.pop %v256
    %s258 = scalar_lea.vmem [#allocation2], 24
    %259 = vst [vmem:[%s258] sm:$0xff] %v257
    %s260 = scalar_lea.vmem [#allocation11], 24
    %v261 = vld [vmem:[%s260] sm:$0xff]
    %262 = vmatpush.msra.mxu0 %v182
    %263 = vmatpush.msra.mxu0 %v181
    %264 = vmatpush.msra.mxu0 %v180
    %265 = vmatpush.msra.mxu0 %v179
    %266 = vmatpush.msra.mxu0 %v178
    %267 = vmatpush.msra.mxu0 %v177
    %268 = vmatpush.msra.mxu0 %v176
    %269 = vmatpush.msra.mxu0 %v175
    %270 = vmatpush.msra.mxu0 %v174
    %271 = vmatpush.msra.mxu0 %v173
    %272 = vmatpush.msra.mxu0 %v172
    %273 = vmatpush.msra.mxu0 %v171
    %274 = vmatpush.msra.mxu0 %v170
    %275 = vmatpush.msra.mxu0 %v169
    %276 = vmatpush.msra.mxu0 %v168
    %277 = vmatpush.msra.mxu0 %v167
    %278 = vmatmul.f32.gmra.mxu0 %v257
    %v279 = vpop.f32.mrf.mxu0
    %v280 = vadd.f32 0.0, %v279
    %281 = vdwg.mxu0
    %v282 = vadd.f32 %v261, %v280
    %v283 = vtanh.pop %v282
    %s284 = scalar_lea.vmem [#allocation2], 32
    %285 = vst [vmem:[%s284] sm:$0xff] %v283
    %s286 = scalar_lea.vmem [#allocation11], 32
    %v287 = vld [vmem:[%s286] sm:$0xff]
    %288 = vmatpush.msra.mxu0 %v182
    %289 = vmatpush.msra.mxu0 %v181
    %290 = vmatpush.msra.mxu0 %v180
    %291 = vmatpush.msra.mxu0 %v179
    %292 = vmatpush.msra.mxu0 %v178
    %293 = vmatpush.msra.mxu0 %v177
    %294 = vmatpush.msra.mxu0 %v176
    %295 = vmatpush.msra.mxu0 %v175
    %296 = vmatpush.msra.mxu0 %v174
    %297 = vmatpush.msra.mxu0 %v173
    %298 = vmatpush.msra.mxu0 %v172
    %299 = vmatpush.msra.mxu0 %v171
    %300 = vmatpush.msra.mxu0 %v170
    %301 = vmatpush.msra.mxu0 %v169
    %302 = vmatpush.msra.mxu0 %v168
    %303 = vmatpush.msra.mxu0 %v167
    %304 = vmatmul.f32.gmra.mxu0 %v283
    %v305 = vpop.f32.mrf.mxu0
    %v306 = vadd.f32 0.0, %v305
    %307 = vdwg.mxu0
    %v308 = vadd.f32 %v287, %v306
    %v309 = vtanh.pop %v308
    %s310 = scalar_lea.vmem [#allocation2], 40
    %311 = vst [vmem:[%s310] sm:$0xff] %v309
    %s312 = scalar_lea.vmem [#allocation11], 40
    %v313 = vld [vmem:[%s312] sm:$0xff]
    %314 = vmatpush.msra.mxu0 %v182
    %315 = vmatpush.msra.mxu0 %v181
    %316 = vmatpush.msra.mxu0 %v180
    %317 = vmatpush.msra.mxu0 %v179
    %318 = vmatpush.msra.mxu0 %v178
    %319 = vmatpush.msra.mxu0 %v177
    %320 = vmatpush.msra.mxu0 %v176
    %321 = vmatpush.msra.mxu0 %v175
    %322 = vmatpush.msra.mxu0 %v174
    %323 = vmatpush.msra.mxu0 %v173
    %324 = vmatpush.msra.mxu0 %v172
    %325 = vmatpush.msra.mxu0 %v171
    %326 = vmatpush.msra.mxu0 %v170
    %327 = vmatpush.msra.mxu0 %v169
    %328 = vmatpush.msra.mxu0 %v168
    %329 = vmatpush.msra.mxu0 %v167
    %330 = vmatmul.f32.gmra.mxu0 %v309
    %v331 = vpop.f32.mrf.mxu0
    %v332 = vadd.f32 0.0, %v331
    %333 = vdwg.mxu0
    %v334 = vadd.f32 %v313, %v332
    %v335 = vtanh.pop %v334
    %s336 = scalar_lea.vmem [#allocation2], 48
    %337 = vst [vmem:[%s336] sm:$0xff] %v335
    %s338 = scalar_lea.vmem [#allocation11], 48
    %v339 = vld [vmem:[%s338] sm:$0xff]
    %340 = vmatpush.msra.mxu0 %v182
    %341 = vmatpush.msra.mxu0 %v181
    %342 = vmatpush.msra.mxu0 %v180
    %343 = vmatpush.msra.mxu0 %v179
    %344 = vmatpush.msra.mxu0 %v178
    %345 = vmatpush.msra.mxu0 %v177
    %346 = vmatpush.msra.mxu0 %v176
    %347 = vmatpush.msra.mxu0 %v175
    %348 = vmatpush.msra.mxu0 %v174
    %349 = vmatpush.msra.mxu0 %v173
    %350 = vmatpush.msra.mxu0 %v172
    %351 = vmatpush.msra.mxu0 %v171
    %352 = vmatpush.msra.mxu0 %v170
    %353 = vmatpush.msra.mxu0 %v169
    %354 = vmatpush.msra.mxu0 %v168
    %355 = vmatpush.msra.mxu0 %v167
    %356 = vmatmul.f32.gmra.mxu0 %v335
    %v357 = vpop.f32.mrf.mxu0
    %v358 = vadd.f32 0.0, %v357
    %359 = vdwg.mxu0
    %v360 = vadd.f32 %v339, %v358
    %v361 = vtanh.pop %v360
    %s362 = scalar_lea.vmem [#allocation2], 56
    %363 = vst [vmem:[%s362] sm:$0xff] %v361
    %s364 = scalar_lea.vmem [#allocation11], 56
    %v365 = vld [vmem:[%s364] sm:$0xff]
    %366 = vmatpush.msra.mxu0 %v182
    %367 = vmatpush.msra.mxu0 %v181
    %368 = vmatpush.msra.mxu0 %v180
    %369 = vmatpush.msra.mxu0 %v179
    %370 = vmatpush.msra.mxu0 %v178
    %371 = vmatpush.msra.mxu0 %v177
    %372 = vmatpush.msra.mxu0 %v176
    %373 = vmatpush.msra.mxu0 %v175
    %374 = vmatpush.msra.mxu0 %v174
    %375 = vmatpush.msra.mxu0 %v173
    %376 = vmatpush.msra.mxu0 %v172
    %377 = vmatpush.msra.mxu0 %v171
    %378 = vmatpush.msra.mxu0 %v170
    %379 = vmatpush.msra.mxu0 %v169
    %380 = vmatpush.msra.mxu0 %v168
    %381 = vmatpush.msra.mxu0 %v167
    %382 = vmatmul.f32.gmra.mxu0 %v361
    %v383 = vpop.f32.mrf.mxu0
    %v384 = vadd.f32 0.0, %v383
    %385 = vdwg.mxu0
    %v386 = vadd.f32 %v365, %v384
    %v387 = vtanh.pop %v386
    %s388 = scalar_lea.vmem [#allocation2], 64
    %389 = vst [vmem:[%s388] sm:$0xff] %v387
    %v390 = vld [vmem:[#allocation2] sm:$0xff]
    %v391 = vld [vmem:[#allocation2 + $0x8] sm:$0xff]
    %v392 = vld [vmem:[#allocation2 + $0x10] sm:$0xff]
    %v393 = vld [vmem:[#allocation2 + $0x18] sm:$0xff]
    %v394 = vld [vmem:[#allocation2 + $0x20] sm:$0xff]
    %v395 = vld [vmem:[#allocation2 + $0x28] sm:$0xff]
    %v396 = vld [vmem:[#allocation2 + $0x30] sm:$0xff]
    %v397 = vld [vmem:[#allocation2 + $0x38] sm:$0xff]
    %v398 = vld [vmem:[%s206] sm:$0xff]
    %v399 = vld [vmem:[%s206 + $0x8] sm:$0xff]
    %v400 = vld [vmem:[%s206 + $0x10] sm:$0xff]
    %v401 = vld [vmem:[%s206 + $0x18] sm:$0xff]
    %v402 = vld [vmem:[%s206 + $0x20] sm:$0xff]
    %v403 = vld [vmem:[%s206 + $0x28] sm:$0xff]
    %v404 = vld [vmem:[%s206 + $0x30] sm:$0xff]
    %v405 = vld [vmem:[%s206 + $0x38] sm:$0xff]
    %v406 = vld [vmem:[%s232] sm:$0xff]
    %v407 = vld [vmem:[%s232 + $0x8] sm:$0xff]
    %v408 = vld [vmem:[%s232 + $0x10] sm:$0xff]
    %v409 = vld [vmem:[%s232 + $0x18] sm:$0xff]
    %v410 = vld [vmem:[%s232 + $0x20] sm:$0xff]
    %v411 = vld [vmem:[%s232 + $0x28] sm:$0xff]
    %v412 = vld [vmem:[%s232 + $0x30] sm:$0xff]
    %v413 = vld [vmem:[%s232 + $0x38] sm:$0xff]
    %v414 = vld [vmem:[#allocation9] sm:$0xff]
    %v415 = vld [vmem:[#allocation9 + $0x8] sm:$0xff]
    %v416 = vld [vmem:[#allocation9 + $0x10] sm:$0xff]
    %v417 = vld [vmem:[#allocation9 + $0x18] sm:$0xff]
    %v418 = vld [vmem:[#allocation9 + $0x20] sm:$0xff]
    %v419 = vld [vmem:[#allocation9 + $0x28] sm:$0xff]
    %v420 = vld [vmem:[#allocation9 + $0x30] sm:$0xff]
    %v421 = vld [vmem:[#allocation9 + $0x38] sm:$0xff]
    %v422 = vld [vmem:[#allocation9 + $0x40] sm:$0xff]
    %v423 = vld [vmem:[#allocation9 + $0x48] sm:$0xff]
    %v424 = vld [vmem:[#allocation9 + $0x50] sm:$0xff]
    %v425 = vld [vmem:[#allocation9 + $0x58] sm:$0xff]
    %v426 = vld [vmem:[#allocation9 + $0x60] sm:$0xff]
    %v427 = vld [vmem:[#allocation9 + $0x68] sm:$0xff]
    %v428 = vld [vmem:[#allocation9 + $0x70] sm:$0xff]
    %v429 = vld [vmem:[#allocation9 + $0x78] sm:$0xff]
    %v430 = vld [vmem:[#allocation9 + $0x80] sm:$0xff]
    %v431 = vld [vmem:[#allocation9 + $0x88] sm:$0xff]
    %v432 = vld [vmem:[#allocation9 + $0x90] sm:$0xff]
    %v433 = vld [vmem:[#allocation9 + $0x98] sm:$0xff]
    %v434 = vld [vmem:[#allocation9 + $0xa0] sm:$0xff]
    %v435 = vld [vmem:[#allocation9 + $0xa8] sm:$0xff]
    %v436 = vld [vmem:[#allocation9 + $0xb0] sm:$0xff]
    %v437 = vld [vmem:[#allocation9 + $0xb8] sm:$0xff]
    %v438 = vld [vmem:[#allocation9 + $0xc0] sm:$0xff]
    %v439 = vld [vmem:[#allocation9 + $0xc8] sm:$0xff]
    %v440 = vld [vmem:[#allocation9 + $0xd0] sm:$0xff]
    %v441 = vld [vmem:[#allocation9 + $0xd8] sm:$0xff]
    %v442 = vld [vmem:[#allocation9 + $0xe0] sm:$0xff]
    %v443 = vld [vmem:[#allocation9 + $0xe8] sm:$0xff]
    %v444 = vld [vmem:[#allocation9 + $0xf0] sm:$0xff]
    %v445 = vld [vmem:[#allocation9 + $0xf8] sm:$0xff]
    %v446 = vld [vmem:[#allocation9 + $0x100] sm:$0xff]
    %v447 = vld [vmem:[#allocation9 + $0x108] sm:$0xff]
    %v448 = vld [vmem:[#allocation9 + $0x110] sm:$0xff]
    %v449 = vld [vmem:[#allocation9 + $0x118] sm:$0xff]
    %v450 = vld [vmem:[#allocation9 + $0x120] sm:$0xff]
    %v451 = vld [vmem:[#allocation9 + $0x128] sm:$0xff]
    %v452 = vld [vmem:[#allocation9 + $0x130] sm:$0xff]
    %v453 = vld [vmem:[#allocation9 + $0x138] sm:$0xff]
    %v454 = vld [vmem:[#allocation9 + $0x140] sm:$0xff]
    %v455 = vld [vmem:[#allocation9 + $0x148] sm:$0xff]
    %v456 = vld [vmem:[#allocation9 + $0x150] sm:$0xff]
    %v457 = vld [vmem:[#allocation9 + $0x158] sm:$0xff]
    %v458 = vld [vmem:[#allocation9 + $0x160] sm:$0xff]
    %v459 = vld [vmem:[#allocation9 + $0x168] sm:$0xff]
    %v460 = vld [vmem:[#allocation9 + $0x170] sm:$0xff]
    %v461 = vld [vmem:[#allocation9 + $0x178] sm:$0xff]
    %v462 = vld [vmem:[#allocation9 + $0x180] sm:$0xff]
    %v463 = vld [vmem:[#allocation9 + $0x188] sm:$0xff]
    %v464 = vld [vmem:[#allocation9 + $0x190] sm:$0xff]
    %v465 = vld [vmem:[#allocation9 + $0x198] sm:$0xff]
    %v466 = vld [vmem:[#allocation9 + $0x1a0] sm:$0xff]
    %v467 = vld [vmem:[#allocation9 + $0x1a8] sm:$0xff]
    %v468 = vld [vmem:[#allocation9 + $0x1b0] sm:$0xff]
    %v469 = vld [vmem:[#allocation9 + $0x1b8] sm:$0xff]
    %v470 = vld [vmem:[#allocation9 + $0x1c0] sm:$0xff]
    %v471 = vld [vmem:[#allocation9 + $0x1c8] sm:$0xff]
    %v472 = vld [vmem:[#allocation9 + $0x1d0] sm:$0xff]
    %v473 = vld [vmem:[#allocation9 + $0x1d8] sm:$0xff]
    %v474 = vld [vmem:[#allocation9 + $0x1e0] sm:$0xff]
    %v475 = vld [vmem:[#allocation9 + $0x1e8] sm:$0xff]
    %v476 = vld [vmem:[#allocation9 + $0x1f0] sm:$0xff]
    %v477 = vld [vmem:[#allocation9 + $0x1f8] sm:$0xff]
    %v478 = vld [vmem:[#allocation9 + $0x200] sm:$0xff]
    %v479 = vld [vmem:[#allocation9 + $0x208] sm:$0xff]
    %v480 = vld [vmem:[#allocation9 + $0x210] sm:$0xff]
    %v481 = vld [vmem:[#allocation9 + $0x218] sm:$0xff]
    %v482 = vld [vmem:[#allocation9 + $0x220] sm:$0xff]
    %v483 = vld [vmem:[#allocation9 + $0x228] sm:$0xff]
    %v484 = vld [vmem:[#allocation9 + $0x230] sm:$0xff]
    %v485 = vld [vmem:[#allocation9 + $0x238] sm:$0xff]
    %v486 = vld [vmem:[#allocation9 + $0x240] sm:$0xff]
    %v487 = vld [vmem:[#allocation9 + $0x248] sm:$0xff]
    %v488 = vld [vmem:[#allocation9 + $0x250] sm:$0xff]
    %v489 = vld [vmem:[#allocation9 + $0x258] sm:$0xff]
    %v490 = vld [vmem:[#allocation9 + $0x260] sm:$0xff]
    %v491 = vld [vmem:[#allocation9 + $0x268] sm:$0xff]
    %v492 = vld [vmem:[#allocation9 + $0x270] sm:$0xff]
    %v493 = vld [vmem:[#allocation9 + $0x278] sm:$0xff]
    %v494 = vld [vmem:[#allocation9 + $0x280] sm:$0xff]
    %v495 = vld [vmem:[#allocation9 + $0x288] sm:$0xff]
    %v496 = vld [vmem:[#allocation9 + $0x290] sm:$0xff]
    %v497 = vld [vmem:[#allocation9 + $0x298] sm:$0xff]
    %v498 = vld [vmem:[#allocation9 + $0x2a0] sm:$0xff]
    %v499 = vld [vmem:[#allocation9 + $0x2a8] sm:$0xff]
    %v500 = vld [vmem:[#allocation9 + $0x2b0] sm:$0xff]
    %v501 = vld [vmem:[#allocation9 + $0x2b8] sm:$0xff]
    %v502 = vld [vmem:[#allocation9 + $0x2c0] sm:$0xff]
    %v503 = vld [vmem:[#allocation9 + $0x2c8] sm:$0xff]
    %v504 = vld [vmem:[#allocation9 + $0x2d0] sm:$0xff]
    %v505 = vld [vmem:[#allocation9 + $0x2d8] sm:$0xff]
    %v506 = vld [vmem:[#allocation9 + $0x2e0] sm:$0xff]
    %v507 = vld [vmem:[#allocation9 + $0x2e8] sm:$0xff]
    %v508 = vld [vmem:[#allocation9 + $0x2f0] sm:$0xff]
    %v509 = vld [vmem:[#allocation9 + $0x2f8] sm:$0xff]
    %v510 = vld [vmem:[%s5] sm:$0x3]
    %v512 = vperm.slane %v510, 0
    %v513 = vperm.slane %v510, 1
    %516 = vmatpush.msra.mxu0 %v444
    %517 = vmatpush.msra.mxu0 %v442
    %518 = vmatpush.msra.mxu0 %v440
    %519 = vmatpush.msra.mxu0 %v438
    %520 = vmatpush.msra.mxu0 %v436
    %521 = vmatpush.msra.mxu0 %v434
    %522 = vmatpush.msra.mxu0 %v432
    %523 = vmatpush.msra.mxu0 %v430
    %524 = vmatpush.msra.mxu0 %v428
    %525 = vmatpush.msra.mxu0 %v426
    %526 = vmatpush.msra.mxu0 %v424
    %527 = vmatpush.msra.mxu0 %v422
    %528 = vmatpush.msra.mxu0 %v420
    %529 = vmatpush.msra.mxu0 %v418
    %530 = vmatpush.msra.mxu0 %v416
    %531 = vmatpush.msra.mxu0 %v414
    %532 = vmatmul.f32.gmra.mxu0 %v390
    %v533 = vpop.f32.mrf.mxu0
    %v534 = vadd.f32 %v512, %v533
    %535 = vmatmul.f32.gmra.mxu0 %v391
    %v536 = vpop.f32.mrf.mxu0
    %v537 = vadd.f32 %v512, %v536
    %538 = vmatmul.f32.gmra.mxu0 %v392
    %v539 = vpop.f32.mrf.mxu0
    %v540 = vadd.f32 %v512, %v539
    %541 = vmatmul.f32.gmra.mxu0 %v393
    %v542 = vpop.f32.mrf.mxu0
    %v543 = vadd.f32 %v512, %v542
    %544 = vmatmul.f32.gmra.mxu0 %v394
    %v545 = vpop.f32.mrf.mxu0
    %v546 = vadd.f32 %v512, %v545
    %547 = vmatmul.f32.gmra.mxu0 %v395
    %v548 = vpop.f32.mrf.mxu0
    %v549 = vadd.f32 %v512, %v548
    %550 = vmatmul.f32.gmra.mxu0 %v396
    %v551 = vpop.f32.mrf.mxu0
    %v552 = vadd.f32 %v512, %v551
    %553 = vmatmul.f32.gmra.mxu0 %v397
    %v554 = vpop.f32.mrf.mxu0
    %v555 = vadd.f32 %v512, %v554
    %556 = vdwg.mxu0
    %557 = vmatpush.msra.mxu0 %v476
    %558 = vmatpush.msra.mxu0 %v474
    %559 = vmatpush.msra.mxu0 %v472
    %560 = vmatpush.msra.mxu0 %v470
    %561 = vmatpush.msra.mxu0 %v468
    %562 = vmatpush.msra.mxu0 %v466
    %563 = vmatpush.msra.mxu0 %v464
    %564 = vmatpush.msra.mxu0 %v462
    %565 = vmatpush.msra.mxu0 %v460
    %566 = vmatpush.msra.mxu0 %v458
    %567 = vmatpush.msra.mxu0 %v456
    %568 = vmatpush.msra.mxu0 %v454
    %569 = vmatpush.msra.mxu0 %v452
    %570 = vmatpush.msra.mxu0 %v450
    %571 = vmatpush.msra.mxu0 %v448
    %572 = vmatpush.msra.mxu0 %v446
    %573 = vmatmul.f32.gmra.mxu0 %v398
    %v574 = vpop.f32.mrf.mxu0
    %v575 = vadd.f32 %v534, %v574
    %576 = vmatmul.f32.gmra.mxu0 %v399
    %v577 = vpop.f32.mrf.mxu0
    %v578 = vadd.f32 %v537, %v577
    %579 = vmatmul.f32.gmra.mxu0 %v400
    %v580 = vpop.f32.mrf.mxu0
    %v581 = vadd.f32 %v540, %v580
    %582 = vmatmul.f32.gmra.mxu0 %v401
    %v583 = vpop.f32.mrf.mxu0
    %v584 = vadd.f32 %v543, %v583
    %585 = vmatmul.f32.gmra.mxu0 %v402
    %v586 = vpop.f32.mrf.mxu0
    %v587 = vadd.f32 %v546, %v586
    %588 = vmatmul.f32.gmra.mxu0 %v403
    %v589 = vpop.f32.mrf.mxu0
    %v590 = vadd.f32 %v549, %v589
    %591 = vmatmul.f32.gmra.mxu0 %v404
    %v592 = vpop.f32.mrf.mxu0
    %v593 = vadd.f32 %v552, %v592
    %594 = vmatmul.f32.gmra.mxu0 %v405
    %v595 = vpop.f32.mrf.mxu0
    %v596 = vadd.f32 %v555, %v595
    %597 = vdwg.mxu0
    %598 = vmatpush.msra.mxu0 %v508
    %599 = vmatpush.msra.mxu0 %v506
    %600 = vmatpush.msra.mxu0 %v504
    %601 = vmatpush.msra.mxu0 %v502
    %602 = vmatpush.msra.mxu0 %v500
    %603 = vmatpush.msra.mxu0 %v498
    %604 = vmatpush.msra.mxu0 %v496
    %605 = vmatpush.msra.mxu0 %v494
    %606 = vmatpush.msra.mxu0 %v492
    %607 = vmatpush.msra.mxu0 %v490
    %608 = vmatpush.msra.mxu0 %v488
    %609 = vmatpush.msra.mxu0 %v486
    %610 = vmatpush.msra.mxu0 %v484
    %611 = vmatpush.msra.mxu0 %v482
    %612 = vmatpush.msra.mxu0 %v480
    %613 = vmatpush.msra.mxu0 %v478
    %614 = vmatmul.f32.gmra.mxu0 %v406
    %v615 = vpop.f32.mrf.mxu0
    %v616 = vadd.f32 %v575, %v615
    %617 = vmatmul.f32.gmra.mxu0 %v407
    %v618 = vpop.f32.mrf.mxu0
    %v619 = vadd.f32 %v578, %v618
    %620 = vmatmul.f32.gmra.mxu0 %v408
    %v621 = vpop.f32.mrf.mxu0
    %v622 = vadd.f32 %v581, %v621
    %623 = vmatmul.f32.gmra.mxu0 %v409
    %v624 = vpop.f32.mrf.mxu0
    %v625 = vadd.f32 %v584, %v624
    %626 = vmatmul.f32.gmra.mxu0 %v410
    %v627 = vpop.f32.mrf.mxu0
    %v628 = vadd.f32 %v587, %v627
    %629 = vmatmul.f32.gmra.mxu0 %v411
    %v630 = vpop.f32.mrf.mxu0
    %v631 = vadd.f32 %v590, %v630
    %632 = vmatmul.f32.gmra.mxu0 %v412
    %v633 = vpop.f32.mrf.mxu0
    %v634 = vadd.f32 %v593, %v633
    %635 = vmatmul.f32.gmra.mxu0 %v413
    %v636 = vpop.f32.mrf.mxu0
    %v637 = vadd.f32 %v596, %v636
    %638 = vdwg.mxu0
    %639 = vmatpush.msra.mxu0 %v445
    %640 = vmatpush.msra.mxu0 %v443
    %641 = vmatpush.msra.mxu0 %v441
    %642 = vmatpush.msra.mxu0 %v439
    %643 = vmatpush.msra.mxu0 %v437
    %644 = vmatpush.msra.mxu0 %v435
    %645 = vmatpush.msra.mxu0 %v433
    %646 = vmatpush.msra.mxu0 %v431
    %647 = vmatpush.msra.mxu0 %v429
    %648 = vmatpush.msra.mxu0 %v427
    %649 = vmatpush.msra.mxu0 %v425
    %650 = vmatpush.msra.mxu0 %v423
    %651 = vmatpush.msra.mxu0 %v421
    %652 = vmatpush.msra.mxu0 %v419
    %653 = vmatpush.msra.mxu0 %v417
    %654 = vmatpush.msra.mxu0 %v415
    %655 = vmatmul.f32.gmra.mxu0 %v390
    %v656 = vpop.f32.mrf.mxu0
    %v657 = vadd.f32 %v513, %v656
    %658 = vmatmul.f32.gmra.mxu0 %v391
    %v659 = vpop.f32.mrf.mxu0
    %v660 = vadd.f32 %v513, %v659
    %661 = vmatmul.f32.gmra.mxu0 %v392
    %v662 = vpop.f32.mrf.mxu0
    %v663 = vadd.f32 %v513, %v662
    %664 = vmatmul.f32.gmra.mxu0 %v393
    %v665 = vpop.f32.mrf.mxu0
    %v666 = vadd.f32 %v513, %v665
    %667 = vmatmul.f32.gmra.mxu0 %v394
    %v668 = vpop.f32.mrf.mxu0
    %v669 = vadd.f32 %v513, %v668
    %670 = vmatmul.f32.gmra.mxu0 %v395
    %v671 = vpop.f32.mrf.mxu0
    %v672 = vadd.f32 %v513, %v671
    %673 = vmatmul.f32.gmra.mxu0 %v396
    %v674 = vpop.f32.mrf.mxu0
    %v675 = vadd.f32 %v513, %v674
    %676 = vmatmul.f32.gmra.mxu0 %v397
    %v677 = vpop.f32.mrf.mxu0
    %v678 = vadd.f32 %v513, %v677
    %679 = vdwg.mxu0
    %680 = vmatpush.msra.mxu0 %v477
    %681 = vmatpush.msra.mxu0 %v475
    %682 = vmatpush.msra.mxu0 %v473
    %683 = vmatpush.msra.mxu0 %v471
    %684 = vmatpush.msra.mxu0 %v469
    %685 = vmatpush.msra.mxu0 %v467
    %686 = vmatpush.msra.mxu0 %v465
    %687 = vmatpush.msra.mxu0 %v463
    %688 = vmatpush.msra.mxu0 %v461
    %689 = vmatpush.msra.mxu0 %v459
    %690 = vmatpush.msra.mxu0 %v457
    %691 = vmatpush.msra.mxu0 %v455
    %692 = vmatpush.msra.mxu0 %v453
    %693 = vmatpush.msra.mxu0 %v451
    %694 = vmatpush.msra.mxu0 %v449
    %695 = vmatpush.msra.mxu0 %v447
    %696 = vmatmul.f32.gmra.mxu0 %v398
    %v697 = vpop.f32.mrf.mxu0
    %v698 = vadd.f32 %v657, %v697
    %699 = vmatmul.f32.gmra.mxu0 %v399
    %v700 = vpop.f32.mrf.mxu0
    %v701 = vadd.f32 %v660, %v700
    %702 = vmatmul.f32.gmra.mxu0 %v400
    %v703 = vpop.f32.mrf.mxu0
    %v704 = vadd.f32 %v663, %v703
    %705 = vmatmul.f32.gmra.mxu0 %v401
    %v706 = vpop.f32.mrf.mxu0
    %v707 = vadd.f32 %v666, %v706
    %708 = vmatmul.f32.gmra.mxu0 %v402
    %v709 = vpop.f32.mrf.mxu0
    %v710 = vadd.f32 %v669, %v709
    %711 = vmatmul.f32.gmra.mxu0 %v403
    %v712 = vpop.f32.mrf.mxu0
    %v713 = vadd.f32 %v672, %v712
    %714 = vmatmul.f32.gmra.mxu0 %v404
    %v715 = vpop.f32.mrf.mxu0
    %v716 = vadd.f32 %v675, %v715
    %717 = vmatmul.f32.gmra.mxu0 %v405
    %v718 = vpop.f32.mrf.mxu0
    %v719 = vadd.f32 %v678, %v718
    %720 = vdwg.mxu0
    %721 = vmatpush.msra.mxu0 %v509
    %722 = vmatpush.msra.mxu0 %v507
    %723 = vmatpush.msra.mxu0 %v505
    %724 = vmatpush.msra.mxu0 %v503
    %725 = vmatpush.msra.mxu0 %v501
    %726 = vmatpush.msra.mxu0 %v499
    %727 = vmatpush.msra.mxu0 %v497
    %728 = vmatpush.msra.mxu0 %v495
    %729 = vmatpush.msra.mxu0 %v493
    %730 = vmatpush.msra.mxu0 %v491
    %731 = vmatpush.msra.mxu0 %v489
    %732 = vmatpush.msra.mxu0 %v487
    %733 = vmatpush.msra.mxu0 %v485
    %734 = vmatpush.msra.mxu0 %v483
    %735 = vmatpush.msra.mxu0 %v481
    %736 = vmatpush.msra.mxu0 %v479
    %737 = vmatmul.f32.gmra.mxu0 %v406
    %v738 = vpop.f32.mrf.mxu0
    %v739 = vadd.f32 %v698, %v738
    %740 = vmatmul.f32.gmra.mxu0 %v407
    %v741 = vpop.f32.mrf.mxu0
    %v742 = vadd.f32 %v701, %v741
    %743 = vmatmul.f32.gmra.mxu0 %v408
    %v744 = vpop.f32.mrf.mxu0
    %v745 = vadd.f32 %v704, %v744
    %746 = vmatmul.f32.gmra.mxu0 %v409
    %v747 = vpop.f32.mrf.mxu0
    %v748 = vadd.f32 %v707, %v747
    %749 = vmatmul.f32.gmra.mxu0 %v410
    %v750 = vpop.f32.mrf.mxu0
    %v751 = vadd.f32 %v710, %v750
    %752 = vmatmul.f32.gmra.mxu0 %v411
    %v753 = vpop.f32.mrf.mxu0
    %v754 = vadd.f32 %v713, %v753
    %755 = vmatmul.f32.gmra.mxu0 %v412
    %v756 = vpop.f32.mrf.mxu0
    %v757 = vadd.f32 %v716, %v756
    %758 = vmatmul.f32.gmra.mxu0 %v413
    %v759 = vpop.f32.mrf.mxu0
    %v760 = vadd.f32 %v719, %v759
    %761 = vdwg.mxu0
    %v762 = vxor.u32 %v739, 2147483648
    %v763 = vxor.u32 %v742, 2147483648
    %v764 = vxor.u32 %v745, 2147483648
    %v765 = vxor.u32 %v748, 2147483648
    %v766 = vxor.u32 %v751, 2147483648
    %v767 = vxor.u32 %v754, 2147483648
    %v768 = vxor.u32 %v757, 2147483648
    %v769 = vxor.u32 %v760, 2147483648
    %v770 = vmul.f32 %v762, 1.442695
    %v771 = vpow.pop %v770
    %v772 = vmul.f32 %v763, 1.442695
    %v773 = vpow.pop %v772
    %v774 = vmul.f32 %v764, 1.442695
    %v775 = vpow.pop %v774
    %v776 = vmul.f32 %v765, 1.442695
    %v777 = vpow.pop %v776
    %v778 = vmul.f32 %v766, 1.442695
    %v779 = vpow.pop %v778
    %v780 = vmul.f32 %v767, 1.442695
    %v781 = vpow.pop %v780
    %v782 = vmul.f32 %v768, 1.442695
    %v783 = vpow.pop %v782
    %v784 = vmul.f32 %v769, 1.442695
    %v785 = vpow.pop %v784
    %v786 = vadd.f32 %v771, 1.0
    %v787 = vadd.f32 %v773, 1.0
    %v788 = vadd.f32 %v775, 1.0
    %v789 = vadd.f32 %v777, 1.0
    %v790 = vadd.f32 %v779, 1.0
    %v791 = vadd.f32 %v781, 1.0
    %v792 = vadd.f32 %v783, 1.0
    %v793 = vadd.f32 %v785, 1.0
    %v794 = vrcp.pop %v786
    %v795 = vmul.f32 %v786, %v794
    %v796 = vsub.f32 1.0, %v795
    %v797 = vmul.f32 %v794, %v796
    %v798 = vadd.f32 %v794, %v797
    %vm799 = vweird.f32 %v786
    %vm800 = vweird.f32 %v794
    %vm801 = vmor %vm799, %vm800
    %v802 = vsel %vm801, %v794, %v798
    %v803 = vand.u32 2147483647, %v786
    %vm804 = vcmp.eq.f32.partialorder %v803, 8.507059e+37
    %v805 = vand.u32 %v786, 2147483648
    %v806 = vor.u32 1.1754944e-38, %v805
    %v807 = vsel %vm804, %v806, %v802
    %v808 = vmul.f32 1.0, %v807
    %v809 = vrcp.pop %v787
    %v810 = vmul.f32 %v787, %v809
    %v811 = vsub.f32 1.0, %v810
    %v812 = vmul.f32 %v809, %v811
    %v813 = vadd.f32 %v809, %v812
    %vm814 = vweird.f32 %v787
    %vm815 = vweird.f32 %v809
    %vm816 = vmor %vm814, %vm815
    %v817 = vsel %vm816, %v809, %v813
    %v818 = vand.u32 2147483647, %v787
    %vm819 = vcmp.eq.f32.partialorder %v818, 8.507059e+37
    %v820 = vand.u32 %v787, 2147483648
    %v821 = vor.u32 1.1754944e-38, %v820
    %v822 = vsel %vm819, %v821, %v817
    %v823 = vmul.f32 1.0, %v822
    %v824 = vrcp.pop %v788
    %v825 = vmul.f32 %v788, %v824
    %v826 = vsub.f32 1.0, %v825
    %v827 = vmul.f32 %v824, %v826
    %v828 = vadd.f32 %v824, %v827
    %vm829 = vweird.f32 %v788
    %vm830 = vweird.f32 %v824
    %vm831 = vmor %vm829, %vm830
    %v832 = vsel %vm831, %v824, %v828
    %v833 = vand.u32 2147483647, %v788
    %vm834 = vcmp.eq.f32.partialorder %v833, 8.507059e+37
    %v835 = vand.u32 %v788, 2147483648
    %v836 = vor.u32 1.1754944e-38, %v835
    %v837 = vsel %vm834, %v836, %v832
    %v838 = vmul.f32 1.0, %v837
    %v839 = vrcp.pop %v789
    %v840 = vmul.f32 %v789, %v839
    %v841 = vsub.f32 1.0, %v840
    %v842 = vmul.f32 %v839, %v841
    %v843 = vadd.f32 %v839, %v842
    %vm844 = vweird.f32 %v789
    %vm845 = vweird.f32 %v839
    %vm846 = vmor %vm844, %vm845
    %v847 = vsel %vm846, %v839, %v843
    %v848 = vand.u32 2147483647, %v789
    %vm849 = vcmp.eq.f32.partialorder %v848, 8.507059e+37
    %v850 = vand.u32 %v789, 2147483648
    %v851 = vor.u32 1.1754944e-38, %v850
    %v852 = vsel %vm849, %v851, %v847
    %v853 = vmul.f32 1.0, %v852
    %v854 = vrcp.pop %v790
    %v855 = vmul.f32 %v790, %v854
    %v856 = vsub.f32 1.0, %v855
    %v857 = vmul.f32 %v854, %v856
    %v858 = vadd.f32 %v854, %v857
    %vm859 = vweird.f32 %v790
    %vm860 = vweird.f32 %v854
    %vm861 = vmor %vm859, %vm860
    %v862 = vsel %vm861, %v854, %v858
    %v863 = vand.u32 2147483647, %v790
    %vm864 = vcmp.eq.f32.partialorder %v863, 8.507059e+37
    %v865 = vand.u32 %v790, 2147483648
    %v866 = vor.u32 1.1754944e-38, %v865
    %v867 = vsel %vm864, %v866, %v862
    %v868 = vmul.f32 1.0, %v867
    %v869 = vrcp.pop %v791
    %v870 = vmul.f32 %v791, %v869
    %v871 = vsub.f32 1.0, %v870
    %v872 = vmul.f32 %v869, %v871
    %v873 = vadd.f32 %v869, %v872
    %vm874 = vweird.f32 %v791
    %vm875 = vweird.f32 %v869
    %vm876 = vmor %vm874, %vm875
    %v877 = vsel %vm876, %v869, %v873
    %v878 = vand.u32 2147483647, %v791
    %vm879 = vcmp.eq.f32.partialorder %v878, 8.507059e+37
    %v880 = vand.u32 %v791, 2147483648
    %v881 = vor.u32 1.1754944e-38, %v880
    %v882 = vsel %vm879, %v881, %v877
    %v883 = vmul.f32 1.0, %v882
    %v884 = vrcp.pop %v792
    %v885 = vmul.f32 %v792, %v884
    %v886 = vsub.f32 1.0, %v885
    %v887 = vmul.f32 %v884, %v886
    %v888 = vadd.f32 %v884, %v887
    %vm889 = vweird.f32 %v792
    %vm890 = vweird.f32 %v884
    %vm891 = vmor %vm889, %vm890
    %v892 = vsel %vm891, %v884, %v888
    %v893 = vand.u32 2147483647, %v792
    %vm894 = vcmp.eq.f32.partialorder %v893, 8.507059e+37
    %v895 = vand.u32 %v792, 2147483648
    %v896 = vor.u32 1.1754944e-38, %v895
    %v897 = vsel %vm894, %v896, %v892
    %v898 = vmul.f32 1.0, %v897
    %v899 = vrcp.pop %v793
    %v900 = vmul.f32 %v793, %v899
    %v901 = vsub.f32 1.0, %v900
    %v902 = vmul.f32 %v899, %v901
    %v903 = vadd.f32 %v899, %v902
    %vm904 = vweird.f32 %v793
    %vm905 = vweird.f32 %v899
    %vm906 = vmor %vm904, %vm905
    %v907 = vsel %vm906, %v899, %v903
    %v908 = vand.u32 2147483647, %v793
    %vm909 = vcmp.eq.f32.partialorder %v908, 8.507059e+37
    %v910 = vand.u32 %v793, 2147483648
    %v911 = vor.u32 1.1754944e-38, %v910
    %v912 = vsel %vm909, %v911, %v907
    %v913 = vmul.f32 1.0, %v912
    %v914 = vmul.f32 %v616, %v808
    %v915 = vmul.f32 %v619, %v823
    %v916 = vmul.f32 %v622, %v838
    %v917 = vmul.f32 %v625, %v853
    %v918 = vmul.f32 %v628, %v868
    %v919 = vmul.f32 %v631, %v883
    %v920 = vmul.f32 %v634, %v898
    %v921 = vmul.f32 %v637, %v913
    %922 = vst [vmem:[#allocation11] sm:$0xff] %v914
    %923 = vst [vmem:[#allocation11 + $0x8] sm:$0xff] %v915
    %924 = vst [vmem:[#allocation11 + $0x10] sm:$0xff] %v916
    %925 = vst [vmem:[#allocation11 + $0x18] sm:$0xff] %v917
    %926 = vst [vmem:[#allocation11 + $0x20] sm:$0xff] %v918
    %927 = vst [vmem:[#allocation11 + $0x28] sm:$0xff] %v919
    %928 = vst [vmem:[#allocation11 + $0x30] sm:$0xff] %v920
    %929 = vst [vmem:[#allocation11 + $0x38] sm:$0xff] %v921
    // Predicated region
    $region42: #{tpu_custom_call.1} parent=1 // pred_check
      _
    $region43: #{tpu_custom_call.1} parent=1 // pred_check_branch
      %931 = sbr.rel (0) target = $region45
    $region44: #{tpu_custom_call.1} parent=1 // pred_region
      %933 = vsyncadd [#allocation5], 0
      %s934 = sshll.u32 [#allocation11], 4
      %s935 = int_to_ptr.vmem [resolvable:$true] %s934
      %s936 = sshll.u32 %s6, 4
      %s937 = int_to_ptr.hbm [resolvable:$true] %s936
      %942 = dma.vmem_to_hbm [thread:$0]  %s935, 1024, %s937, [#allocation5], 128, 128, 8
    $region45: #{tpu_custom_call.1} parent=1 // pred_fallthru
      _
    // Predicated region
    $region46: #{tpu_custom_call.1} parent=1 // pred_check
      _
    $region47: #{tpu_custom_call.1} parent=1 // pred_check_branch
      %944 = sbr.rel (0) target = $region49
    $region48: #{tpu_custom_call.1} parent=1 // pred_region
      %946 = dma.done [#allocation5], 1024
    $region49: #{tpu_custom_call.1} parent=1 // pred_fallthru
      _
    %947 = vsyncpa [#allocation4], 1
    %948 = vsyncpa [#allocation7], 1
    %949 = vsyncpa [#allocation10], 1
    %950 = vsyncpa [#allocation5], 1

</llo_original>
